<compile_context>
chip_gen: v7x
topology: tpu7x:2x2x1
jax: 0.10.0
libtpu: 0.0.40
codegen_flags: <defaults>
</compile_context>

<pallas_src>
import functools

import jax
import jax.numpy as jnp
from jax.experimental import pallas as pl
from jax.experimental.pallas import tpu as pltpu


_DOT_DIMS = (((1,), (1,)), ((), ()))   # contract dim 1 of lhs with dim 1 of rhs


def _fc_scale(pooled, w1, w2):
    """sigmoid(relu(pooled @ w1.T) @ w2.T) in f32, HIGHEST MXU precision."""
    h = jax.lax.dot_general(pooled, w1.astype(jnp.float32), _DOT_DIMS,
                            precision=jax.lax.Precision.HIGHEST,
                            preferred_element_type=jnp.float32)
    h = jnp.maximum(h, 0.0)
    s = jax.lax.dot_general(h, w2.astype(jnp.float32), _DOT_DIMS,
                            precision=jax.lax.Precision.HIGHEST,
                            preferred_element_type=jnp.float32)
    return jax.nn.sigmoid(s)


# ----------------------------------------------------------------------------
# Single-pass fused kernel: pool + fc1 + relu + fc2 + sigmoid + rescale,
# operating directly on NCHW-derived (bt, C, HW) blocks (HW on lanes).
# ----------------------------------------------------------------------------
def _se_fused_kernel(x_ref, w1_ref, w2_ref, o_ref):
    xf = x_ref[...].astype(jnp.float32)            # (bt, C, HW)
    pooled = jnp.mean(xf, axis=-1)                 # (bt, C), full-f32 reduction
    s = _fc_scale(pooled, w1_ref[...], w2_ref[...])  # (bt, C)
    o_ref[...] = (xf * s[:, :, None]).astype(o_ref.dtype)


# ----------------------------------------------------------------------------
# Two-pass fallback (large HW*C slabs): pass 1 accumulates channel sums over
# HW tiles and emits the per-image channel scale; pass 2 re-reads x tiles and
# applies the scale.
# ----------------------------------------------------------------------------
def _se_scale_kernel(x_ref, w1_ref, w2_ref, s_ref, acc_ref, *, hw_total, hw_tile):
    h_idx = pl.program_id(1)

    @pl.when(h_idx == 0)
    def _init():
        acc_ref[...] = jnp.zeros_like(acc_ref)

    xf = x_ref[...].astype(jnp.float32)            # (1, C, hw_tile)
    lane = jax.lax.broadcasted_iota(jnp.int32, xf.shape, 2)
    valid = (h_idx * hw_tile + lane) < hw_total    # mask ragged last HW tile
    acc_ref[...] += jnp.sum(jnp.where(valid, xf, 0.0), axis=-1)   # (1, C)

    @pl.when(h_idx == pl.num_programs(1) - 1)
    def _finalize():
        pooled = acc_ref[...] * (1.0 / hw_total)                  # (1, C)
        s = _fc_scale(pooled, w1_ref[...], w2_ref[...])           # (1, C)
        s_ref[...] = s[:, None, :]                                # (1, 1, C)


def _se_apply_kernel(x_ref, s_ref, o_ref):
    xf = x_ref[...].astype(jnp.float32)            # (1, C, hw_tile)
    s = s_ref[...].reshape(1, -1)                  # (1, C)
    o_ref[...] = (xf * s[:, :, None]).astype(o_ref.dtype)


# ----------------------------------------------------------------------------
# Wrapper
# ----------------------------------------------------------------------------
def _vmem_capacity_bytes(default=64 << 20):
    try:
        cap = getattr(pltpu.get_tpu_info(), "vmem_capacity_bytes", None)
        if cap:
            return int(cap)
    except Exception:
        pass
    return default   # conservative: works on 64 MiB and 128 MiB parts


def _round_down(x, m):
    return max(m, (x // m) * m)


def squeeze_excitation(x, w1, w2, *, force_two_pass_hw_tile=None):
    """SqueezeExcitation forward.

    x  : [N, C, H, W] (NCHW, as in the PyTorch module), f32 or bf16
    w1 : [C//r, C]    (PyTorch fc1.weight[:, :, 0, 0], native orientation)
    w2 : [C, C//r]    (PyTorch fc2.weight[:, :, 0, 0], native orientation)
    """
    N, C, H, W = x.shape
    Cr = w1.shape[0]
    HW = H * W
    itemsize = jnp.dtype(x.dtype).itemsize

    # Free reshape (merges contiguous trailing dims) -- no HBM round trip.
    x3 = x.reshape(N, C, HW)

    vmem_cap = _vmem_capacity_bytes()
    headroom = 8 << 20
    vmem_cap_limit = max(16 << 20, vmem_cap - headroom)
    # Generation-aware live-block budget: ~24 MiB on 64 MiB VMEM (v7x),
    # ~56 MiB on 128 MiB VMEM (v5e/v6e).
    budget = max(16 << 20, vmem_cap // 2 - headroom)

    weight_bytes = 2 * C * Cr * jnp.dtype(w1.dtype).itemsize
    slack = (2 << 20) + 4 * weight_bytes
    slab = C * HW * itemsize                        # one image, one dbl-buf copy

    single_pass_ok = (4 * slab + slack) <= budget and force_two_pass_hw_tile is None

    if single_pass_ok:
        # Largest batch tile that keeps the double-buffered in+out slabs within
        # budget, while leaving >= 2 grid steps when N >= 2 (v7x has 2 TCs).
        max_bt = max(1, (budget - slack) // (4 * slab))
        bt = min(max_bt, pl.cdiv(N, 2)) if N >= 2 else 1
        bt = max(1, min(bt, N))
        grid = (pl.cdiv(N, bt),)                    # ragged last block is OK
        need = 4 * bt * slab + slack
        vmem_limit = int(min(vmem_cap_limit, max(32 << 20, need)))
        # TODO(synk): for batch-1 workloads on v7x, split the scale phase over
        # HW (core_map / second parallel axis) so both TensorCores pull HBM.

        out3 = pl.pallas_call(
            _se_fused_kernel,
            out_shape=jax.ShapeDtypeStruct((N, C, HW), x.dtype),
            grid_spec=pltpu.PrefetchScalarGridSpec(
                num_scalar_prefetch=0,
                grid=grid,
                in_specs=[
                    pl.BlockSpec((bt, C, HW), lambda n: (n, 0, 0)),
                    # Constant index maps: weights stay resident across steps.
                    pl.BlockSpec((Cr, C), lambda n: (0, 0)),
                    pl.BlockSpec((C, Cr), lambda n: (0, 0)),
                ],
                out_specs=pl.BlockSpec((bt, C, HW), lambda n: (n, 0, 0)),
            ),
            compiler_params=pltpu.CompilerParams(
                dimension_semantics=("parallel",),
                vmem_limit_bytes=vmem_limit,
            ),
        )(x3, w1, w2)
        return out3.reshape(N, C, H, W)

    # ---------------- Two-pass fallback (HW-tiled) ----------------
    if force_two_pass_hw_tile is not None:
        hw_tile = int(force_two_pass_hw_tile)        # test hook; multiple of 128
    else:
        cap_elems = max(128, (budget - slack) // (4 * C * itemsize))
        hw_tile = HW if HW <= cap_elems else _round_down(cap_elems, 128)
    n_hw = pl.cdiv(HW, hw_tile)
    need = 4 * C * hw_tile * itemsize + slack
    vmem_limit = int(min(vmem_cap_limit, max(32 << 20, need)))

    # Pass 1: per-image channel scale s = sigmoid(fc2(relu(fc1(mean(x))))).
    s = pl.pallas_call(
        functools.partial(_se_scale_kernel, hw_total=HW, hw_tile=hw_tile),
        out_shape=jax.ShapeDtypeStruct((N, 1, C), jnp.float32),
        grid_spec=pltpu.PrefetchScalarGridSpec(
            num_scalar_prefetch=0,
            grid=(N, n_hw),
            in_specs=[
                pl.BlockSpec((1, C, hw_tile), lambda b, h: (b, 0, h)),
                pl.BlockSpec((Cr, C), lambda b, h: (0, 0)),
                pl.BlockSpec((C, Cr), lambda b, h: (0, 0)),
            ],
            out_specs=pl.BlockSpec((1, 1, C), lambda b, h: (b, 0, 0)),
            scratch_shapes=[pltpu.VMEM((1, C), jnp.float32)],
        ),
        compiler_params=pltpu.CompilerParams(
            dimension_semantics=("parallel", "arbitrary"),
            vmem_limit_bytes=vmem_limit,
        ),
    )(x3, w1, w2)

    # Pass 2: out = x * s  (channel-wise rescale), HW-tiled.
    out3 = pl.pallas_call(
        _se_apply_kernel,
        out_shape=jax.ShapeDtypeStruct((N, C, HW), x.dtype),
        grid_spec=pltpu.PrefetchScalarGridSpec(
            num_scalar_prefetch=0,
            grid=(N, n_hw),
            in_specs=[
                pl.BlockSpec((1, C, hw_tile), lambda b, h: (b, 0, h)),
                pl.BlockSpec((1, 1, C), lambda b, h: (b, 0, 0)),
            ],
            out_specs=pl.BlockSpec((1, C, hw_tile), lambda b, h: (b, 0, h)),
        ),
        compiler_params=pltpu.CompilerParams(
            dimension_semantics=("parallel", "parallel"),
            vmem_limit_bytes=vmem_limit,
        ),
    )(x3, s)
    return out3.reshape(N, C, H, W)


# ----------------------------------------------------------------------------
# Reference + tests
# ----------------------------------------------------------------------------
def _reference(x, w1, w2):
    xf = x.astype(jnp.float32)
    pooled = jnp.mean(xf, axis=(2, 3))                               # (N, C)
    h = jnp.maximum(jnp.dot(pooled, w1.astype(jnp.float32).T,
                            precision=jax.lax.Precision.HIGHEST), 0.0)
    s = jax.nn.sigmoid(jnp.dot(h, w2.astype(jnp.float32).T,
                               precision=jax.lax.Precision.HIGHEST))
    return xf * s[:, :, None, None]


if __name__ == "__main__":
    key = jax.random.PRNGKey(0)

    def run_case(case_key, N, C, H, W, reduction, dtype=jnp.float32,
                 atol=1e-4, rtol=1e-4, force_two_pass_hw_tile=None):
        k_x, k_w1, k_w2 = jax.random.split(case_key, 3)
        Cr = C // reduction
        x = jax.random.normal(k_x, (N, C, H, W), dtype=jnp.float32).astype(dtype)
        # PyTorch-native weight orientation: fc1 (Cr, C), fc2 (C, Cr).
        w1 = (jax.random.normal(k_w1, (Cr, C), dtype=jnp.float32) * 0.5).astype(dtype)
        w2 = (jax.random.normal(k_w2, (C, Cr), dtype=jnp.float32) * 0.5).astype(dtype)

        out = jax.block_until_ready(
            squeeze_excitation(x, w1, w2,
                               force_two_pass_hw_tile=force_two_pass_hw_tile))
        ref = _reference(x, w1, w2)
        assert out.shape == x.shape and out.dtype == x.dtype
        assert jnp.allclose(out.astype(jnp.float32), ref, atol=atol, rtol=rtol), \
            "mismatch vs reference"

    k1, k2, k3, k4 = jax.random.split(key, 4)
    # Small shape consistent with the module spec.
    run_case(k1, N=2, C=4, H=16, W=16, reduction=2)
    # Odd batch -> ragged last batch block (non-divisor cdiv tiling path).
    run_case(k2, N=3, C=128, H=14, W=14, reduction=4)
    # Force the two-pass HW-tiled fallback (ragged last HW tile, masked sum).
    run_case(k3, N=2, C=64, H=15, W=15, reduction=4, force_two_pass_hw_tile=128)
    # bf16 I/O path (f32 accumulation inside the kernel).
    run_case(k4, N=2, C=128, H=8, W=8, reduction=4, dtype=jnp.bfloat16,
             atol=3e-2, rtol=3e-2)

    print("KERNEL_OK")
</pallas_src>

<mosaic_0001>
module attributes {stable_mosaic.version = 11 : i64} {
  func.func @_se_fused_kernel(%arg0: i32, %arg1: memref<1x4x256xf32, #tpu.memory_space<vmem>>, %arg2: memref<2x4xf32, #tpu.memory_space<vmem>>, %arg3: memref<4x2xf32, #tpu.memory_space<vmem>>, %arg4: memref<1x4x256xf32, #tpu.memory_space<vmem>>) attributes {dimension_semantics = [#tpu.dimension_semantics<parallel>], iteration_bounds = array<i64: 2>, scalar_prefetch = 0 : i64, scratch_operands = 0 : i64, tpu.core_type = #tpu.core_type<tc>, window_params = [{transform_indices = @transform_0, window_bounds = array<i64: 1, 4, 256>}, {pipeline_mode = #tpu.pipeline_mode<synchronous>, transform_indices = @transform_1, window_bounds = array<i64: 2, 4>}, {pipeline_mode = #tpu.pipeline_mode<synchronous>, transform_indices = @transform_2, window_bounds = array<i64: 4, 2>}, {transform_indices = @transform_3, window_bounds = array<i64: 1, 4, 256>}]} {
    %c0 = arith.constant 0 : index
    %c0_0 = arith.constant 0 : index
    %c0_1 = arith.constant 0 : index
    %0 = vector.load %arg1[%c0, %c0_0, %c0_1] : memref<1x4x256xf32, #tpu.memory_space<vmem>>, vector<1x4x256xf32>
    %cst = arith.constant dense<0.000000e+00> : vector<1x4xf32>
    %1 = vector.multi_reduction <add>, %0, %cst [2] : vector<1x4x256xf32> to vector<1x4xf32>
    %cst_2 = arith.constant 2.560000e+02 : f32
    %2 = vector.broadcast %cst_2 : f32 to vector<1x4xf32>
    %3 = arith.divf %1, %2 : vector<1x4xf32>
    %c0_3 = arith.constant 0 : index
    %c0_4 = arith.constant 0 : index
    %4 = vector.load %arg2[%c0_3, %c0_4] : memref<2x4xf32, #tpu.memory_space<vmem>>, vector<2x4xf32>
    %c0_5 = arith.constant 0 : index
    %c0_6 = arith.constant 0 : index
    %5 = vector.load %arg3[%c0_5, %c0_6] : memref<4x2xf32, #tpu.memory_space<vmem>>, vector<4x2xf32>
    %cst_7 = arith.constant dense<0.000000e+00> : vector<1x2xf32>
    %6 = tpu.matmul %3, %4, %cst_7 {dimension_numbers = #tpu.dot_dimension_numbers<[1], [1], [0], [0], [0, 0, 1, 0], [], []>, precision = #tpu.contract_precision<fp32>} : vector<1x4xf32>, vector<2x4xf32>, vector<1x2xf32> -> vector<1x2xf32>
    %cst_8 = arith.constant 0.000000e+00 : f32
    %7 = vector.broadcast %cst_8 : f32 to vector<1x2xf32>
    %8 = arith.maximumf %6, %7 : vector<1x2xf32>
    %cst_9 = arith.constant dense<0.000000e+00> : vector<1x4xf32>
    %9 = tpu.matmul %8, %5, %cst_9 {dimension_numbers = #tpu.dot_dimension_numbers<[1], [1], [0], [0], [0, 0, 1, 0], [], []>, precision = #tpu.contract_precision<fp32>} : vector<1x2xf32>, vector<4x2xf32>, vector<1x4xf32> -> vector<1x4xf32>
    %10 = arith.negf %9 : vector<1x4xf32>
    %11 = math.exp %10 : vector<1x4xf32>
    %cst_10 = arith.constant 1.000000e+00 : f32
    %12 = vector.broadcast %cst_10 : f32 to vector<1x4xf32>
    %13 = arith.addf %12, %11 : vector<1x4xf32>
    %14 = arith.divf %12, %13 : vector<1x4xf32>
    %15 = vector.shape_cast %14 : vector<1x4xf32> to vector<1x4x1xf32>
    %16 = vector.broadcast %15 : vector<1x4x1xf32> to vector<1x4x256xf32>
    %17 = arith.mulf %0, %16 : vector<1x4x256xf32>
    %c0_11 = arith.constant 0 : index
    %c0_12 = arith.constant 0 : index
    %c0_13 = arith.constant 0 : index
    %18 = vector.load %arg4[%c0_11, %c0_12, %c0_13] : memref<1x4x256xf32, #tpu.memory_space<vmem>>, vector<1x4x256xf32>
    tpu.vector_store %arg4[%c0_11, %c0_12, %c0_13], %17 {strides = array<i32>} : memref<1x4x256xf32, #tpu.memory_space<vmem>>, vector<1x4x256xf32>,
    return
  }
  func.func @transform_0(%arg0: i32) -> (i32, i32, i32) {
    %c0_i32 = arith.constant 0 : i32
    %c0_i32_0 = arith.constant 0 : i32
    %c0_i32_1 = arith.constant 0 : i32
    return %arg0, %c0_i32, %c0_i32_0 : i32, i32, i32
  }
  func.func @transform_1(%arg0: i32) -> (i32, i32) {
    %c0_i32 = arith.constant 0 : i32
    %c0_i32_0 = arith.constant 0 : i32
    %c0_i32_1 = arith.constant 0 : i32
    return %c0_i32, %c0_i32_0 : i32, i32
  }
  func.func @transform_2(%arg0: i32) -> (i32, i32) {
    %c0_i32 = arith.constant 0 : i32
    %c0_i32_0 = arith.constant 0 : i32
    %c0_i32_1 = arith.constant 0 : i32
    return %c0_i32, %c0_i32_0 : i32, i32
  }
  func.func @transform_3(%arg0: i32) -> (i32, i32, i32) {
    %c0_i32 = arith.constant 0 : i32
    %c0_i32_0 = arith.constant 0 : i32
    %c0_i32_1 = arith.constant 0 : i32
    return %arg0, %c0_i32, %c0_i32_0 : i32, i32, i32
  }
}

</mosaic_0001>

<llo_original>
// kernel: tpu_custom_call.1
$region0: #{tpu_custom_call.1}
  #allocation0 [shape = 'u32[]', space=smem, size = 0x4, offset = 0x4, fixed_abs, tag = 'smem constant byte address 0x4 - core index']
  #allocation1 [shape = 'u32[144,128]{1,0:T(1,128)}', space=vmem, size = 0x12000, scoped, tag = 'internal scratch']
  %s0 = inlined_call_operand.hbm [shape: f32[2,4,256], index: 0, kind: input, shape index: {}]
  %s1 = inlined_call_operand.vmem [shape: f32[2,4], index: 1, kind: input, shape index: {}]
  %s2 = inlined_call_operand.vmem [shape: f32[4,2], index: 2, kind: input, shape index: {}]
  %s3 = inlined_call_operand.hbm [shape: f32[2,4,256], index: 3, kind: output, shape index: {}]
  %s4 = sld [smem:[#allocation0]]
  $region49: #{tpu_custom_call.1} parent=0
    _
  %s6 = ssub.s32 1, %s4
  %s7 = scalar_select 0, %s6, %s4
  $region1: #{tpu_custom_call.1} parent=0
    #allocation2 [shape = 'u8[8192]{0}', space=vmem, size = 0x2000, scoped, tag = 'input window, operand 0']
    #allocation3 [shape = 's32[2]{0}', space=sflag, size = 0x8, scoped, tag = 'scoped memory for tpu_custom_call.1']
    #allocation4 [shape = 's32[2]{0}', space=sflag, size = 0x8, scoped, tag = 'scoped memory for tpu_custom_call.1']
    #allocation5 [shape = 'u8[8192]{0}', space=vmem, size = 0x2000, scoped, tag = 'output window, operand 0']
    %8 = vsyncpa [#allocation3], 0
    %s9 = scalar_lea.sflag [#allocation3], 1
    %10 = vsyncpa %s9, 0
    %11 = vsyncpa [#allocation4], 0
    %s12 = scalar_lea.sflag [#allocation4], 1
    %13 = vsyncpa %s12, 0
    loop: start=0, step=1, limit=4
    $region2: #{tpu_custom_call.1} parent=1 // loop_pre_header
      _
    $region3: #{tpu_custom_call.1} parent=1 // loop_header
      %s15 = sphi 0, %s19
      %p16 = scmp.ge.s32.totalorder %s15, 4
      %s25 = sphi 0, %s27
      %s28 = sphi 0, %s25
      %s29 = sphi 0, %s28
      %s45 = sphi 0, %s29
      %s49 = sphi 0, %s49
      %s51 = sphi 0, %s49
      %s52 = sphi 0, %s51
      %s66 = sphi 0, %s52
      %s70 = sphi 0, %s70
      %s72 = sphi 0, %s70
      %s73 = sphi 0, %s72
      %s87 = sphi 0, %s73
      %s93 = sphi 0, %s95
      %s96 = sphi 0, %s93
      %s97 = sphi 0, %s96
      %s113 = sphi 0, %s97
    $region4: #{tpu_custom_call.1} parent=1 // loop_header_branch
      %18 = sbr.rel (%p16) target = $region8
    $region5: #{tpu_custom_call.1} parent=1 // loop_body
      %s20 = ssub.s32 %s15, 1
      %s21 = ssub.s32 %s15, 2
      %s22 = sadd.s32 %s15, 1
      %s23 = ssub.s32 %s15, %s22
      %p24 = scmp.eq.s32.totalorder %s23, 0
      %s26 = sadd.s32 %s25, 1
      %s27 = scalar_select %p24, %s25, %s26
      %p30 = pneg %p24
      %p31 = scmp.eq.s32.totalorder %s15, 1
      %p32 = por %p30, %p31
      %p33 = scmp.ne.s32.totalorder %s25, %s28
      %p34 = scmp.eq.s32.totalorder %s15, 0
      %p35 = por %p33, %p34
      %p36 = scmp.ne.s32.totalorder %s25, %s28
      %p37 = scmp.eq.s32.totalorder %s20, 1
      %p38 = por %p36, %p37
      %p39 = scmp.ne.s32.totalorder %s28, %s29
      %p40 = scmp.eq.s32.totalorder %s20, 0
      %p41 = por %p39, %p40
      %p42 = scmp.ne.s32.totalorder %s28, %s29
      %p43 = scmp.eq.s32.totalorder %s21, 1
      %p44 = por %p42, %p43
      %p46 = scmp.ne.s32.totalorder %s29, %s45
      %p47 = scmp.eq.s32.totalorder %s21, 0
      %p48 = por %p46, %p47
      %s50 = sadd.s32 %s49, 1
      %p53 = scmp.eq.s32.totalorder %s15, 1
      %p54 = scmp.ne.s32.totalorder %s49, %s51
      %p55 = scmp.eq.s32.totalorder %s15, 0
      %p56 = por %p54, %p55
      %p57 = scmp.ne.s32.totalorder %s49, %s51
      %p58 = scmp.eq.s32.totalorder %s20, 1
      %p59 = por %p57, %p58
      %p60 = scmp.ne.s32.totalorder %s51, %s52
      %p61 = scmp.eq.s32.totalorder %s20, 0
      %p62 = por %p60, %p61
      %p63 = scmp.ne.s32.totalorder %s51, %s52
      %p64 = scmp.eq.s32.totalorder %s21, 1
      %p65 = por %p63, %p64
      %p67 = scmp.ne.s32.totalorder %s52, %s66
      %p68 = scmp.eq.s32.totalorder %s21, 0
      %p69 = por %p67, %p68
      %s71 = sadd.s32 %s70, 1
      %p74 = scmp.eq.s32.totalorder %s15, 1
      %p75 = scmp.ne.s32.totalorder %s70, %s72
      %p76 = scmp.eq.s32.totalorder %s15, 0
      %p77 = por %p75, %p76
      %p78 = scmp.ne.s32.totalorder %s70, %s72
      %p79 = scmp.eq.s32.totalorder %s20, 1
      %p80 = por %p78, %p79
      %p81 = scmp.ne.s32.totalorder %s72, %s73
      %p82 = scmp.eq.s32.totalorder %s20, 0
      %p83 = por %p81, %p82
      %p84 = scmp.ne.s32.totalorder %s72, %s73
      %p85 = scmp.eq.s32.totalorder %s21, 1
      %p86 = por %p84, %p85
      %p88 = scmp.ne.s32.totalorder %s73, %s87
      %p89 = scmp.eq.s32.totalorder %s21, 0
      %p90 = por %p88, %p89
      %s91 = ssub.s32 %s15, %s22
      %p92 = scmp.eq.s32.totalorder %s91, 0
      %s94 = sadd.s32 %s93, 1
      %s95 = scalar_select %p92, %s93, %s94
      %p98 = pneg %p92
      %p99 = scmp.eq.s32.totalorder %s15, 1
      %p100 = por %p98, %p99
      %p101 = scmp.ne.s32.totalorder %s93, %s96
      %p102 = scmp.eq.s32.totalorder %s15, 0
      %p103 = por %p101, %p102
      %p104 = scmp.ne.s32.totalorder %s93, %s96
      %p105 = scmp.eq.s32.totalorder %s20, 1
      %p106 = por %p104, %p105
      %p107 = scmp.ne.s32.totalorder %s96, %s97
      %p108 = scmp.eq.s32.totalorder %s20, 0
      %p109 = por %p107, %p108
      %p110 = scmp.ne.s32.totalorder %s96, %s97
      %p111 = scmp.eq.s32.totalorder %s21, 1
      %p112 = por %p110, %p111
      %p114 = scmp.ne.s32.totalorder %s97, %s113
      %p115 = scmp.eq.s32.totalorder %s21, 0
      %p116 = por %p114, %p115
      %p117 = scmp.le.s32.totalorder 1, %s15
      %p118 = scmp.lt.s32.totalorder %s15, 3
      %p119 = pnand %p117, %p118
      %p120 = pneg %p119
      // Predicated region
      $region9: #{tpu_custom_call.1} parent=5 // pred_check
        _
      $region10: #{tpu_custom_call.1} parent=5 // pred_check_branch
        %122 = sbr.rel (%p119) target = $region12
      $region11: #{tpu_custom_call.1} parent=5 // pred_region
        %s123 = ssub.s32 %s15, 1
        // Predicated region
        $region13: #{tpu_custom_call.1} parent=11 // pred_check
          %p124 = pneg %p62
        $region14: #{tpu_custom_call.1} parent=11 // pred_check_branch
          %126 = sbr.rel (%p124) target = $region16
        $region15: #{tpu_custom_call.1} parent=11 // pred_region
          _
        $region16: #{tpu_custom_call.1} parent=11 // pred_fallthru
          _
        // Predicated region
        $region17: #{tpu_custom_call.1} parent=11 // pred_check
          %p127 = pneg %p83
        $region18: #{tpu_custom_call.1} parent=11 // pred_check_branch
          %129 = sbr.rel (%p127) target = $region20
        $region19: #{tpu_custom_call.1} parent=11 // pred_region
          _
        $region20: #{tpu_custom_call.1} parent=11 // pred_fallthru
          _
      $region12: #{tpu_custom_call.1} parent=5 // pred_fallthru
        _
      %p130 = scmp.lt.s32.totalorder %s15, 2
      // Predicated region
      $region21: #{tpu_custom_call.1} parent=5 // pred_check
        %p131 = pneg %p130
      $region22: #{tpu_custom_call.1} parent=5 // pred_check_branch
        %133 = sbr.rel (%p131) target = $region24
      $region23: #{tpu_custom_call.1} parent=5 // pred_region
        // Predicated region
        $region25: #{tpu_custom_call.1} parent=23 // pred_check
          %p134 = pneg %p35
        $region26: #{tpu_custom_call.1} parent=23 // pred_check_branch
          %136 = sbr.rel (%p134) target = $region28
        $region27: #{tpu_custom_call.1} parent=23 // pred_region
          %s137 = sand.u32 %s25, 1
          %s138 = scalar_lea.sflag [#allocation3], %s137
          %s139 = sand.u32 %s25, 1
          %s140 = smul.addr %s139, 8
          %s141 = scalar_lea.vmem [#allocation2], %s140
          %s143 = ssub.s32 128, 128
          %144 = vsyncadd %s138, %s143
          %s145 = smul.addr %s15, 2
          %s146 = smul.addr %s145, 64
          %s147 = scalar_lea.hbm %s0, %s146
          %s149 = sshll.u32 %s141, 4
          %s150 = int_to_ptr.vmem [resolvable:$true] %s149
          %152 = dma.hbm_to_vmem [thread:$0]  %s147, 128, %s150, %s138
        $region28: #{tpu_custom_call.1} parent=23 // pred_fallthru
          _
      $region24: #{tpu_custom_call.1} parent=5 // pred_fallthru
        _
      %p153 = scmp.le.s32.totalorder 1, %s15
      %p154 = scmp.lt.s32.totalorder %s15, 3
      %p155 = pnand %p153, %p154
      %p156 = pneg %p155
      // Predicated region
      $region29: #{tpu_custom_call.1} parent=5 // pred_check
        _
      $region30: #{tpu_custom_call.1} parent=5 // pred_check_branch
        %158 = sbr.rel (%p155) target = $region32
      $region31: #{tpu_custom_call.1} parent=5 // pred_region
        %s159 = ssub.s32 %s15, 1
        %s160 = sand.u32 %s28, 1
        %s161 = scalar_lea.sflag [#allocation3], %s160
        %s162 = sand.u32 %s28, 1
        %s163 = smul.addr %s162, 8
        %s164 = scalar_lea.vmem [#allocation2], %s163
        // Predicated region
        $region33: #{tpu_custom_call.1} parent=31 // pred_check
          %p165 = pneg %p41
        $region34: #{tpu_custom_call.1} parent=31 // pred_check_branch
          %167 = sbr.rel (%p165) target = $region36
        $region35: #{tpu_custom_call.1} parent=31 // pred_region
          %168 = dma.done %s161, 128
        $region36: #{tpu_custom_call.1} parent=31 // pred_fallthru
          _
        %s169 = sand.u32 %s28, 1
        %s170 = scalar_lea.sflag [#allocation3], %s169
        %s171 = sand.u32 %s28, 1
        %s172 = smul.addr %s171, 8
        %s173 = scalar_lea.vmem [#allocation2], %s172
        %p174 = pneg %p41
        %p175 = pneg %p38
        %p176 = pneg %p62
        %p177 = pneg %p59
        %p178 = pneg %p83
        %p179 = pneg %p80
        %p180 = pneg %p109
        %p181 = pneg %p106
        %s182 = sand.u32 %s96, 1
        %s183 = scalar_lea.sflag [#allocation4], %s182
        %s184 = sand.u32 %s96, 1
        %s185 = smul.addr %s184, 8
        %s186 = scalar_lea.vmem [#allocation5], %s185
        %v187 = vld [vmem:[%s164] sm:$0xff]
        %v189 = vcombine.high %v187, %v187
        %vm191 = vcmask 1043456
        %v192 = vsel %vm191, %v187, 0.0
        %v193 = vsel %vm191, %v189, 0.0
        %v194 = vadd.f32 %v192, %v193
        %195 = vadd.xlane.f32.xlu0 %v194
        %v196 = vpop.xlane.xlu0 %195
        %v197 = vrcp.pop 256.0
        %v198 = vmul.f32 %v196, %v197
        %v199 = vld [vmem:[%s1] sm:$0x3]
        %v200 = vld [vmem:[%s2] sm:$0xf]
        %v202 = vlaneseq
        %v203 = vand.u32 %v202, 127
        %v204 = vlaneseq
        %v205 = vshrl.u32 %v204, 7
        %v206 = vsub.s32 %v203, %v205
        %v207 = vrot.slane %v198, %v206
        %vm208 = vcmask 31744
        %v209 = vsel %vm208, %v207, 0
        %v212 = vsel %vm208, %v199, 0
        %214 = vmatprep.subr.mxu0 0.0
        %v215 = vand.u32 %v212, 4294901760
        %216 = vmatpush1.xpose.msra.mxu0 %v215
        %217 = vmatprep.subr.mxu0 0.0
        %218 = vmatpush1.xpose.msra.mxu0 0.0
        %219 = vmatprep.subr.mxu0 0.0
        %220 = vmatpush1.xpose.msra.mxu0 0.0
        %221 = vmatprep.subr.mxu0 0.0
        %222 = vmatpush1.xpose.msra.mxu0 0.0
        %223 = vmatprep.subr.mxu0 0.0
        %224 = vmatpush1.xpose.msra.mxu0 0.0
        %225 = vmatprep.subr.mxu0 0.0
        %226 = vmatpush1.xpose.msra.mxu0 0.0
        %227 = vmatprep.subr.mxu0 0.0
        %228 = vmatpush1.xpose.msra.mxu0 0.0
        %229 = vmatprep.subr.mxu0 0.0
        %230 = vmatpush1.xpose.msra.mxu0 0.0
        %231 = vmatprep.subr.mxu0 0.0
        %232 = vmatpush1.xpose.msra.mxu0 0.0
        %233 = vmatprep.subr.mxu0 0.0
        %234 = vmatpush1.xpose.msra.mxu0 0.0
        %235 = vmatprep.subr.mxu0 0.0
        %236 = vmatpush1.xpose.msra.mxu0 0.0
        %237 = vmatprep.subr.mxu0 0.0
        %238 = vmatpush1.xpose.msra.mxu0 0.0
        %239 = vmatprep.subr.mxu0 0.0
        %240 = vmatpush1.xpose.msra.mxu0 0.0
        %241 = vmatprep.subr.mxu0 0.0
        %242 = vmatpush1.xpose.msra.mxu0 0.0
        %243 = vmatprep.subr.mxu0 0.0
        %244 = vmatpush1.xpose.msra.mxu0 0.0
        %245 = vmatprep.subr.mxu0 0.0
        %246 = vmatpush1.xpose.msra.mxu0 0.0
        %247 = vmatprep.subr.mxu0 0.0
        %248 = vmatpush1.xpose.msra.mxu0 0.0
        %249 = vmatprep.subr.mxu0 0.0
        %250 = vmatpush1.xpose.msra.mxu0 0.0
        %251 = vmatprep.subr.mxu0 0.0
        %252 = vmatpush1.xpose.msra.mxu0 0.0
        %253 = vmatprep.subr.mxu0 0.0
        %254 = vmatpush1.xpose.msra.mxu0 0.0
        %255 = vmatprep.subr.mxu0 0.0
        %256 = vmatpush1.xpose.msra.mxu0 0.0
        %257 = vmatprep.subr.mxu0 0.0
        %258 = vmatpush1.xpose.msra.mxu0 0.0
        %259 = vmatprep.subr.mxu0 0.0
        %260 = vmatpush1.xpose.msra.mxu0 0.0
        %261 = vmatprep.subr.mxu0 0.0
        %262 = vmatpush1.xpose.msra.mxu0 0.0
        %263 = vmatprep.subr.mxu0 0.0
        %264 = vmatpush1.xpose.msra.mxu0 0.0
        %265 = vmatprep.subr.mxu0 0.0
        %266 = vmatpush1.xpose.msra.mxu0 0.0
        %267 = vmatprep.subr.mxu0 0.0
        %268 = vmatpush1.xpose.msra.mxu0 0.0
        %269 = vmatprep.subr.mxu0 0.0
        %270 = vmatpush1.xpose.msra.mxu0 0.0
        %271 = vmatprep.subr.mxu0 0.0
        %272 = vmatpush1.xpose.msra.mxu0 0.0
        %273 = vmatprep.subr.mxu0 0.0
        %274 = vmatpush1.xpose.msra.mxu0 0.0
        %275 = vmatprep.subr.mxu0 0.0
        %276 = vmatpush1.xpose.msra.mxu0 0.0
        %277 = vmatprep.subr.mxu0 0.0
        %278 = vmatpush1.xpose.msra.mxu0 0.0
        %279 = vmatprep.mubr.f32.mxu0 0.0
        %v280 = vand.u32 %v209, 4294901760
        %v281 = vsub.f32 %v209, %v280
        %v282 = vand.u32 %v281, 4294901760
        %v283 = vsub.f32 %v281, %v282
        %v284 = vand.u32 %v283, 4294901760
        %285 = vmatmul.mubr.f32.gmra.mrb[0].mxu0 %v284
        %v286 = vpop.f32.mrb[0].mxu0
        %v287 = vadd.f32 0.0, %v286
        %v288 = vpop.f32.mrb[0].mxu0
        %289 = vdwg.mxu0
        %290 = vmatprep.subr.mxu0 0.0
        %v291 = vand.u32 %v212, 4294901760
        %v292 = vsub.f32 %v212, %v291
        %v293 = vand.u32 %v292, 4294901760
        %v294 = vsub.f32 %v292, %v293
        %v295 = vand.u32 %v294, 4294901760
        %296 = vmatpush1.xpose.msra.mxu0 %v295
        %297 = vmatprep.subr.mxu0 0.0
        %298 = vmatpush1.xpose.msra.mxu0 0.0
        %299 = vmatprep.subr.mxu0 0.0
        %300 = vmatpush1.xpose.msra.mxu0 0.0
        %301 = vmatprep.subr.mxu0 0.0
        %302 = vmatpush1.xpose.msra.mxu0 0.0
        %303 = vmatprep.subr.mxu0 0.0
        %304 = vmatpush1.xpose.msra.mxu0 0.0
        %305 = vmatprep.subr.mxu0 0.0
        %306 = vmatpush1.xpose.msra.mxu0 0.0
        %307 = vmatprep.subr.mxu0 0.0
        %308 = vmatpush1.xpose.msra.mxu0 0.0
        %309 = vmatprep.subr.mxu0 0.0
        %310 = vmatpush1.xpose.msra.mxu0 0.0
        %311 = vmatprep.subr.mxu0 0.0
        %312 = vmatpush1.xpose.msra.mxu0 0.0
        %313 = vmatprep.subr.mxu0 0.0
        %314 = vmatpush1.xpose.msra.mxu0 0.0
        %315 = vmatprep.subr.mxu0 0.0
        %316 = vmatpush1.xpose.msra.mxu0 0.0
        %317 = vmatprep.subr.mxu0 0.0
        %318 = vmatpush1.xpose.msra.mxu0 0.0
        %319 = vmatprep.subr.mxu0 0.0
        %320 = vmatpush1.xpose.msra.mxu0 0.0
        %321 = vmatprep.subr.mxu0 0.0
        %322 = vmatpush1.xpose.msra.mxu0 0.0
        %323 = vmatprep.subr.mxu0 0.0
        %324 = vmatpush1.xpose.msra.mxu0 0.0
        %325 = vmatprep.subr.mxu0 0.0
        %326 = vmatpush1.xpose.msra.mxu0 0.0
        %327 = vmatprep.subr.mxu0 0.0
        %328 = vmatpush1.xpose.msra.mxu0 0.0
        %329 = vmatprep.subr.mxu0 0.0
        %330 = vmatpush1.xpose.msra.mxu0 0.0
        %331 = vmatprep.subr.mxu0 0.0
        %332 = vmatpush1.xpose.msra.mxu0 0.0
        %333 = vmatprep.subr.mxu0 0.0
        %334 = vmatpush1.xpose.msra.mxu0 0.0
        %335 = vmatprep.subr.mxu0 0.0
        %336 = vmatpush1.xpose.msra.mxu0 0.0
        %337 = vmatprep.subr.mxu0 0.0
        %338 = vmatpush1.xpose.msra.mxu0 0.0
        %339 = vmatprep.subr.mxu0 0.0
        %340 = vmatpush1.xpose.msra.mxu0 0.0
        %341 = vmatprep.subr.mxu0 0.0
        %342 = vmatpush1.xpose.msra.mxu0 0.0
        %343 = vmatprep.subr.mxu0 0.0
        %344 = vmatpush1.xpose.msra.mxu0 0.0
        %345 = vmatprep.subr.mxu0 0.0
        %346 = vmatpush1.xpose.msra.mxu0 0.0
        %347 = vmatprep.subr.mxu0 0.0
        %348 = vmatpush1.xpose.msra.mxu0 0.0
        %349 = vmatprep.subr.mxu0 0.0
        %350 = vmatpush1.xpose.msra.mxu0 0.0
        %351 = vmatprep.subr.mxu0 0.0
        %352 = vmatpush1.xpose.msra.mxu0 0.0
        %353 = vmatprep.subr.mxu0 0.0
        %354 = vmatpush1.xpose.msra.mxu0 0.0
        %355 = vmatprep.subr.mxu0 0.0
        %356 = vmatpush1.xpose.msra.mxu0 0.0
        %357 = vmatprep.subr.mxu0 0.0
        %358 = vmatpush1.xpose.msra.mxu0 0.0
        %359 = vmatprep.mubr.f32.mxu0 0.0
        %v360 = vand.u32 %v209, 4294901760
        %361 = vmatmul.mubr.f32.gmra.mrb[0].mxu0 %v360
        %v362 = vpop.f32.mrb[0].mxu0
        %v363 = vadd.f32 %v287, %v362
        %v364 = vpop.f32.mrb[0].mxu0
        %365 = vdwg.mxu0
        %366 = vmatprep.subr.mxu0 0.0
        %v367 = vand.u32 %v212, 4294901760
        %v368 = vsub.f32 %v212, %v367
        %369 = vmatpush1.xpose.msra.mxu0 %v368
        %370 = vmatprep.subr.mxu0 0.0
        %371 = vmatpush1.xpose.msra.mxu0 0.0
        %372 = vmatprep.subr.mxu0 0.0
        %373 = vmatpush1.xpose.msra.mxu0 0.0
        %374 = vmatprep.subr.mxu0 0.0
        %375 = vmatpush1.xpose.msra.mxu0 0.0
        %376 = vmatprep.subr.mxu0 0.0
        %377 = vmatpush1.xpose.msra.mxu0 0.0
        %378 = vmatprep.subr.mxu0 0.0
        %379 = vmatpush1.xpose.msra.mxu0 0.0
        %380 = vmatprep.subr.mxu0 0.0
        %381 = vmatpush1.xpose.msra.mxu0 0.0
        %382 = vmatprep.subr.mxu0 0.0
        %383 = vmatpush1.xpose.msra.mxu0 0.0
        %384 = vmatprep.subr.mxu0 0.0
        %385 = vmatpush1.xpose.msra.mxu0 0.0
        %386 = vmatprep.subr.mxu0 0.0
        %387 = vmatpush1.xpose.msra.mxu0 0.0
        %388 = vmatprep.subr.mxu0 0.0
        %389 = vmatpush1.xpose.msra.mxu0 0.0
        %390 = vmatprep.subr.mxu0 0.0
        %391 = vmatpush1.xpose.msra.mxu0 0.0
        %392 = vmatprep.subr.mxu0 0.0
        %393 = vmatpush1.xpose.msra.mxu0 0.0
        %394 = vmatprep.subr.mxu0 0.0
        %395 = vmatpush1.xpose.msra.mxu0 0.0
        %396 = vmatprep.subr.mxu0 0.0
        %397 = vmatpush1.xpose.msra.mxu0 0.0
        %398 = vmatprep.subr.mxu0 0.0
        %399 = vmatpush1.xpose.msra.mxu0 0.0
        %400 = vmatprep.subr.mxu0 0.0
        %401 = vmatpush1.xpose.msra.mxu0 0.0
        %402 = vmatprep.subr.mxu0 0.0
        %403 = vmatpush1.xpose.msra.mxu0 0.0
        %404 = vmatprep.subr.mxu0 0.0
        %405 = vmatpush1.xpose.msra.mxu0 0.0
        %406 = vmatprep.subr.mxu0 0.0
        %407 = vmatpush1.xpose.msra.mxu0 0.0
        %408 = vmatprep.subr.mxu0 0.0
        %409 = vmatpush1.xpose.msra.mxu0 0.0
        %410 = vmatprep.subr.mxu0 0.0
        %411 = vmatpush1.xpose.msra.mxu0 0.0
        %412 = vmatprep.subr.mxu0 0.0
        %413 = vmatpush1.xpose.msra.mxu0 0.0
        %414 = vmatprep.subr.mxu0 0.0
        %415 = vmatpush1.xpose.msra.mxu0 0.0
        %416 = vmatprep.subr.mxu0 0.0
        %417 = vmatpush1.xpose.msra.mxu0 0.0
        %418 = vmatprep.subr.mxu0 0.0
        %419 = vmatpush1.xpose.msra.mxu0 0.0
        %420 = vmatprep.subr.mxu0 0.0
        %421 = vmatpush1.xpose.msra.mxu0 0.0
        %422 = vmatprep.subr.mxu0 0.0
        %423 = vmatpush1.xpose.msra.mxu0 0.0
        %424 = vmatprep.subr.mxu0 0.0
        %425 = vmatpush1.xpose.msra.mxu0 0.0
        %426 = vmatprep.subr.mxu0 0.0
        %427 = vmatpush1.xpose.msra.mxu0 0.0
        %428 = vmatprep.subr.mxu0 0.0
        %429 = vmatpush1.xpose.msra.mxu0 0.0
        %430 = vmatprep.subr.mxu0 0.0
        %431 = vmatpush1.xpose.msra.mxu0 0.0
        %432 = vmatprep.mubr.f32.mxu0 0.0
        %v433 = vand.u32 %v209, 4294901760
        %v434 = vsub.f32 %v209, %v433
        %435 = vmatmul.mubr.f32.gmra.mrb[0].mxu0 %v434
        %v436 = vpop.f32.mrb[0].mxu0
        %v437 = vadd.f32 %v363, %v436
        %v438 = vpop.f32.mrb[0].mxu0
        %439 = vdwg.mxu0
        %440 = vmatprep.subr.mxu0 0.0
        %v441 = vand.u32 %v212, 4294901760
        %442 = vmatpush1.xpose.msra.mxu0 %v441
        %443 = vmatprep.subr.mxu0 0.0
        %444 = vmatpush1.xpose.msra.mxu0 0.0
        %445 = vmatprep.subr.mxu0 0.0
        %446 = vmatpush1.xpose.msra.mxu0 0.0
        %447 = vmatprep.subr.mxu0 0.0
        %448 = vmatpush1.xpose.msra.mxu0 0.0
        %449 = vmatprep.subr.mxu0 0.0
        %450 = vmatpush1.xpose.msra.mxu0 0.0
        %451 = vmatprep.subr.mxu0 0.0
        %452 = vmatpush1.xpose.msra.mxu0 0.0
        %453 = vmatprep.subr.mxu0 0.0
        %454 = vmatpush1.xpose.msra.mxu0 0.0
        %455 = vmatprep.subr.mxu0 0.0
        %456 = vmatpush1.xpose.msra.mxu0 0.0
        %457 = vmatprep.subr.mxu0 0.0
        %458 = vmatpush1.xpose.msra.mxu0 0.0
        %459 = vmatprep.subr.mxu0 0.0
        %460 = vmatpush1.xpose.msra.mxu0 0.0
        %461 = vmatprep.subr.mxu0 0.0
        %462 = vmatpush1.xpose.msra.mxu0 0.0
        %463 = vmatprep.subr.mxu0 0.0
        %464 = vmatpush1.xpose.msra.mxu0 0.0
        %465 = vmatprep.subr.mxu0 0.0
        %466 = vmatpush1.xpose.msra.mxu0 0.0
        %467 = vmatprep.subr.mxu0 0.0
        %468 = vmatpush1.xpose.msra.mxu0 0.0
        %469 = vmatprep.subr.mxu0 0.0
        %470 = vmatpush1.xpose.msra.mxu0 0.0
        %471 = vmatprep.subr.mxu0 0.0
        %472 = vmatpush1.xpose.msra.mxu0 0.0
        %473 = vmatprep.subr.mxu0 0.0
        %474 = vmatpush1.xpose.msra.mxu0 0.0
        %475 = vmatprep.subr.mxu0 0.0
        %476 = vmatpush1.xpose.msra.mxu0 0.0
        %477 = vmatprep.subr.mxu0 0.0
        %478 = vmatpush1.xpose.msra.mxu0 0.0
        %479 = vmatprep.subr.mxu0 0.0
        %480 = vmatpush1.xpose.msra.mxu0 0.0
        %481 = vmatprep.subr.mxu0 0.0
        %482 = vmatpush1.xpose.msra.mxu0 0.0
        %483 = vmatprep.subr.mxu0 0.0
        %484 = vmatpush1.xpose.msra.mxu0 0.0
        %485 = vmatprep.subr.mxu0 0.0
        %486 = vmatpush1.xpose.msra.mxu0 0.0
        %487 = vmatprep.subr.mxu0 0.0
        %488 = vmatpush1.xpose.msra.mxu0 0.0
        %489 = vmatprep.subr.mxu0 0.0
        %490 = vmatpush1.xpose.msra.mxu0 0.0
        %491 = vmatprep.subr.mxu0 0.0
        %492 = vmatpush1.xpose.msra.mxu0 0.0
        %493 = vmatprep.subr.mxu0 0.0
        %494 = vmatpush1.xpose.msra.mxu0 0.0
        %495 = vmatprep.subr.mxu0 0.0
        %496 = vmatpush1.xpose.msra.mxu0 0.0
        %497 = vmatprep.subr.mxu0 0.0
        %498 = vmatpush1.xpose.msra.mxu0 0.0
        %499 = vmatprep.subr.mxu0 0.0
        %500 = vmatpush1.xpose.msra.mxu0 0.0
        %501 = vmatprep.subr.mxu0 0.0
        %502 = vmatpush1.xpose.msra.mxu0 0.0
        %503 = vmatprep.subr.mxu0 0.0
        %504 = vmatpush1.xpose.msra.mxu0 0.0
        %505 = vmatprep.mubr.f32.mxu0 0.0
        %v506 = vand.u32 %v209, 4294901760
        %v507 = vsub.f32 %v209, %v506
        %v508 = vand.u32 %v507, 4294901760
        %509 = vmatmul.mubr.f32.gmra.mrb[0].mxu0 %v508
        %v510 = vpop.f32.mrb[0].mxu0
        %v511 = vadd.f32 %v437, %v510
        %v512 = vpop.f32.mrb[0].mxu0
        %513 = vdwg.mxu0
        %514 = vmatprep.subr.mxu0 0.0
        %v515 = vand.u32 %v212, 4294901760
        %v516 = vsub.f32 %v212, %v515
        %v517 = vand.u32 %v516, 4294901760
        %518 = vmatpush1.xpose.msra.mxu0 %v517
        %519 = vmatprep.subr.mxu0 0.0
        %520 = vmatpush1.xpose.msra.mxu0 0.0
        %521 = vmatprep.subr.mxu0 0.0
        %522 = vmatpush1.xpose.msra.mxu0 0.0
        %523 = vmatprep.subr.mxu0 0.0
        %524 = vmatpush1.xpose.msra.mxu0 0.0
        %525 = vmatprep.subr.mxu0 0.0
        %526 = vmatpush1.xpose.msra.mxu0 0.0
        %527 = vmatprep.subr.mxu0 0.0
        %528 = vmatpush1.xpose.msra.mxu0 0.0
        %529 = vmatprep.subr.mxu0 0.0
        %530 = vmatpush1.xpose.msra.mxu0 0.0
        %531 = vmatprep.subr.mxu0 0.0
        %532 = vmatpush1.xpose.msra.mxu0 0.0
        %533 = vmatprep.subr.mxu0 0.0
        %534 = vmatpush1.xpose.msra.mxu0 0.0
        %535 = vmatprep.subr.mxu0 0.0
        %536 = vmatpush1.xpose.msra.mxu0 0.0
        %537 = vmatprep.subr.mxu0 0.0
        %538 = vmatpush1.xpose.msra.mxu0 0.0
        %539 = vmatprep.subr.mxu0 0.0
        %540 = vmatpush1.xpose.msra.mxu0 0.0
        %541 = vmatprep.subr.mxu0 0.0
        %542 = vmatpush1.xpose.msra.mxu0 0.0
        %543 = vmatprep.subr.mxu0 0.0
        %544 = vmatpush1.xpose.msra.mxu0 0.0
        %545 = vmatprep.subr.mxu0 0.0
        %546 = vmatpush1.xpose.msra.mxu0 0.0
        %547 = vmatprep.subr.mxu0 0.0
        %548 = vmatpush1.xpose.msra.mxu0 0.0
        %549 = vmatprep.subr.mxu0 0.0
        %550 = vmatpush1.xpose.msra.mxu0 0.0
        %551 = vmatprep.subr.mxu0 0.0
        %552 = vmatpush1.xpose.msra.mxu0 0.0
        %553 = vmatprep.subr.mxu0 0.0
        %554 = vmatpush1.xpose.msra.mxu0 0.0
        %555 = vmatprep.subr.mxu0 0.0
        %556 = vmatpush1.xpose.msra.mxu0 0.0
        %557 = vmatprep.subr.mxu0 0.0
        %558 = vmatpush1.xpose.msra.mxu0 0.0
        %559 = vmatprep.subr.mxu0 0.0
        %560 = vmatpush1.xpose.msra.mxu0 0.0
        %561 = vmatprep.subr.mxu0 0.0
        %562 = vmatpush1.xpose.msra.mxu0 0.0
        %563 = vmatprep.subr.mxu0 0.0
        %564 = vmatpush1.xpose.msra.mxu0 0.0
        %565 = vmatprep.subr.mxu0 0.0
        %566 = vmatpush1.xpose.msra.mxu0 0.0
        %567 = vmatprep.subr.mxu0 0.0
        %568 = vmatpush1.xpose.msra.mxu0 0.0
        %569 = vmatprep.subr.mxu0 0.0
        %570 = vmatpush1.xpose.msra.mxu0 0.0
        %571 = vmatprep.subr.mxu0 0.0
        %572 = vmatpush1.xpose.msra.mxu0 0.0
        %573 = vmatprep.subr.mxu0 0.0
        %574 = vmatpush1.xpose.msra.mxu0 0.0
        %575 = vmatprep.subr.mxu0 0.0
        %576 = vmatpush1.xpose.msra.mxu0 0.0
        %577 = vmatprep.subr.mxu0 0.0
        %578 = vmatpush1.xpose.msra.mxu0 0.0
        %579 = vmatprep.subr.mxu0 0.0
        %580 = vmatpush1.xpose.msra.mxu0 0.0
        %581 = vmatprep.mubr.f32.mxu0 0.0
        %v582 = vand.u32 %v209, 4294901760
        %583 = vmatmul.mubr.f32.gmra.mrb[0].mxu0 %v582
        %v584 = vpop.f32.mrb[0].mxu0
        %v585 = vadd.f32 %v511, %v584
        %v586 = vpop.f32.mrb[0].mxu0
        %587 = vdwg.mxu0
        %588 = vmatprep.subr.mxu0 0.0
        %v589 = vand.u32 %v212, 4294901760
        %590 = vmatpush1.xpose.msra.mxu0 %v589
        %591 = vmatprep.subr.mxu0 0.0
        %592 = vmatpush1.xpose.msra.mxu0 0.0
        %593 = vmatprep.subr.mxu0 0.0
        %594 = vmatpush1.xpose.msra.mxu0 0.0
        %595 = vmatprep.subr.mxu0 0.0
        %596 = vmatpush1.xpose.msra.mxu0 0.0
        %597 = vmatprep.subr.mxu0 0.0
        %598 = vmatpush1.xpose.msra.mxu0 0.0
        %599 = vmatprep.subr.mxu0 0.0
        %600 = vmatpush1.xpose.msra.mxu0 0.0
        %601 = vmatprep.subr.mxu0 0.0
        %602 = vmatpush1.xpose.msra.mxu0 0.0
        %603 = vmatprep.subr.mxu0 0.0
        %604 = vmatpush1.xpose.msra.mxu0 0.0
        %605 = vmatprep.subr.mxu0 0.0
        %606 = vmatpush1.xpose.msra.mxu0 0.0
        %607 = vmatprep.subr.mxu0 0.0
        %608 = vmatpush1.xpose.msra.mxu0 0.0
        %609 = vmatprep.subr.mxu0 0.0
        %610 = vmatpush1.xpose.msra.mxu0 0.0
        %611 = vmatprep.subr.mxu0 0.0
        %612 = vmatpush1.xpose.msra.mxu0 0.0
        %613 = vmatprep.subr.mxu0 0.0
        %614 = vmatpush1.xpose.msra.mxu0 0.0
        %615 = vmatprep.subr.mxu0 0.0
        %616 = vmatpush1.xpose.msra.mxu0 0.0
        %617 = vmatprep.subr.mxu0 0.0
        %618 = vmatpush1.xpose.msra.mxu0 0.0
        %619 = vmatprep.subr.mxu0 0.0
        %620 = vmatpush1.xpose.msra.mxu0 0.0
        %621 = vmatprep.subr.mxu0 0.0
        %622 = vmatpush1.xpose.msra.mxu0 0.0
        %623 = vmatprep.subr.mxu0 0.0
        %624 = vmatpush1.xpose.msra.mxu0 0.0
        %625 = vmatprep.subr.mxu0 0.0
        %626 = vmatpush1.xpose.msra.mxu0 0.0
        %627 = vmatprep.subr.mxu0 0.0
        %628 = vmatpush1.xpose.msra.mxu0 0.0
        %629 = vmatprep.subr.mxu0 0.0
        %630 = vmatpush1.xpose.msra.mxu0 0.0
        %631 = vmatprep.subr.mxu0 0.0
        %632 = vmatpush1.xpose.msra.mxu0 0.0
        %633 = vmatprep.subr.mxu0 0.0
        %634 = vmatpush1.xpose.msra.mxu0 0.0
        %635 = vmatprep.subr.mxu0 0.0
        %636 = vmatpush1.xpose.msra.mxu0 0.0
        %637 = vmatprep.subr.mxu0 0.0
        %638 = vmatpush1.xpose.msra.mxu0 0.0
        %639 = vmatprep.subr.mxu0 0.0
        %640 = vmatpush1.xpose.msra.mxu0 0.0
        %641 = vmatprep.subr.mxu0 0.0
        %642 = vmatpush1.xpose.msra.mxu0 0.0
        %643 = vmatprep.subr.mxu0 0.0
        %644 = vmatpush1.xpose.msra.mxu0 0.0
        %645 = vmatprep.subr.mxu0 0.0
        %646 = vmatpush1.xpose.msra.mxu0 0.0
        %647 = vmatprep.subr.mxu0 0.0
        %648 = vmatpush1.xpose.msra.mxu0 0.0
        %649 = vmatprep.subr.mxu0 0.0
        %650 = vmatpush1.xpose.msra.mxu0 0.0
        %651 = vmatprep.subr.mxu0 0.0
        %652 = vmatpush1.xpose.msra.mxu0 0.0
        %653 = vmatprep.mubr.f32.mxu0 0.0
        %v654 = vand.u32 %v209, 4294901760
        %655 = vmatmul.mubr.f32.gmra.mrb[0].mxu0 %v654
        %v656 = vpop.f32.mrb[0].mxu0
        %v657 = vadd.f32 %v585, %v656
        %v658 = vpop.f32.mrb[0].mxu0
        %659 = vdwg.mxu0
        %v660 = vmax.f32 %v657, 0.0
        %vm661 = vcmask 15360
        %v663 = vsel %vm661, %v660, 0
        %v666 = vsel %vm661, %v200, 0
        %668 = vmatprep.subr.mxu0 0.0
        %v669 = vand.u32 %v666, 4294901760
        %670 = vmatpush1.xpose.msra.mxu0 %v669
        %671 = vmatprep.subr.mxu0 0.0
        %672 = vmatpush1.xpose.msra.mxu0 0.0
        %673 = vmatprep.subr.mxu0 0.0
        %674 = vmatpush1.xpose.msra.mxu0 0.0
        %675 = vmatprep.subr.mxu0 0.0
        %676 = vmatpush1.xpose.msra.mxu0 0.0
        %677 = vmatprep.subr.mxu0 0.0
        %678 = vmatpush1.xpose.msra.mxu0 0.0
        %679 = vmatprep.subr.mxu0 0.0
        %680 = vmatpush1.xpose.msra.mxu0 0.0
        %681 = vmatprep.subr.mxu0 0.0
        %682 = vmatpush1.xpose.msra.mxu0 0.0
        %683 = vmatprep.subr.mxu0 0.0
        %684 = vmatpush1.xpose.msra.mxu0 0.0
        %685 = vmatprep.subr.mxu0 0.0
        %686 = vmatpush1.xpose.msra.mxu0 0.0
        %687 = vmatprep.subr.mxu0 0.0
        %688 = vmatpush1.xpose.msra.mxu0 0.0
        %689 = vmatprep.subr.mxu0 0.0
        %690 = vmatpush1.xpose.msra.mxu0 0.0
        %691 = vmatprep.subr.mxu0 0.0
        %692 = vmatpush1.xpose.msra.mxu0 0.0
        %693 = vmatprep.subr.mxu0 0.0
        %694 = vmatpush1.xpose.msra.mxu0 0.0
        %695 = vmatprep.subr.mxu0 0.0
        %696 = vmatpush1.xpose.msra.mxu0 0.0
        %697 = vmatprep.subr.mxu0 0.0
        %698 = vmatpush1.xpose.msra.mxu0 0.0
        %699 = vmatprep.subr.mxu0 0.0
        %700 = vmatpush1.xpose.msra.mxu0 0.0
        %701 = vmatprep.subr.mxu0 0.0
        %702 = vmatpush1.xpose.msra.mxu0 0.0
        %703 = vmatprep.subr.mxu0 0.0
        %704 = vmatpush1.xpose.msra.mxu0 0.0
        %705 = vmatprep.subr.mxu0 0.0
        %706 = vmatpush1.xpose.msra.mxu0 0.0
        %707 = vmatprep.subr.mxu0 0.0
        %708 = vmatpush1.xpose.msra.mxu0 0.0
        %709 = vmatprep.subr.mxu0 0.0
        %710 = vmatpush1.xpose.msra.mxu0 0.0
        %711 = vmatprep.subr.mxu0 0.0
        %712 = vmatpush1.xpose.msra.mxu0 0.0
        %713 = vmatprep.subr.mxu0 0.0
        %714 = vmatpush1.xpose.msra.mxu0 0.0
        %715 = vmatprep.subr.mxu0 0.0
        %716 = vmatpush1.xpose.msra.mxu0 0.0
        %717 = vmatprep.subr.mxu0 0.0
        %718 = vmatpush1.xpose.msra.mxu0 0.0
        %719 = vmatprep.subr.mxu0 0.0
        %720 = vmatpush1.xpose.msra.mxu0 0.0
        %721 = vmatprep.subr.mxu0 0.0
        %722 = vmatpush1.xpose.msra.mxu0 0.0
        %723 = vmatprep.subr.mxu0 0.0
        %724 = vmatpush1.xpose.msra.mxu0 0.0
        %725 = vmatprep.subr.mxu0 0.0
        %726 = vmatpush1.xpose.msra.mxu0 0.0
        %727 = vmatprep.subr.mxu0 0.0
        %728 = vmatpush1.xpose.msra.mxu0 0.0
        %729 = vmatprep.subr.mxu0 0.0
        %730 = vmatpush1.xpose.msra.mxu0 0.0
        %731 = vmatprep.subr.mxu0 0.0
        %732 = vmatpush1.xpose.msra.mxu0 0.0
        %733 = vmatprep.mubr.f32.mxu0 0.0
        %v734 = vand.u32 %v663, 4294901760
        %v735 = vsub.f32 %v663, %v734
        %v736 = vand.u32 %v735, 4294901760
        %v737 = vsub.f32 %v735, %v736
        %v738 = vand.u32 %v737, 4294901760
        %739 = vmatmul.mubr.f32.gmra.mrb[0].mxu0 %v738
        %v740 = vpop.f32.mrb[0].mxu0
        %v741 = vadd.f32 0.0, %v740
        %v742 = vpop.f32.mrb[0].mxu0
        %743 = vdwg.mxu0
        %744 = vmatprep.subr.mxu0 0.0
        %v745 = vand.u32 %v666, 4294901760
        %v746 = vsub.f32 %v666, %v745
        %v747 = vand.u32 %v746, 4294901760
        %v748 = vsub.f32 %v746, %v747
        %v749 = vand.u32 %v748, 4294901760
        %750 = vmatpush1.xpose.msra.mxu0 %v749
        %751 = vmatprep.subr.mxu0 0.0
        %752 = vmatpush1.xpose.msra.mxu0 0.0
        %753 = vmatprep.subr.mxu0 0.0
        %754 = vmatpush1.xpose.msra.mxu0 0.0
        %755 = vmatprep.subr.mxu0 0.0
        %756 = vmatpush1.xpose.msra.mxu0 0.0
        %757 = vmatprep.subr.mxu0 0.0
        %758 = vmatpush1.xpose.msra.mxu0 0.0
        %759 = vmatprep.subr.mxu0 0.0
        %760 = vmatpush1.xpose.msra.mxu0 0.0
        %761 = vmatprep.subr.mxu0 0.0
        %762 = vmatpush1.xpose.msra.mxu0 0.0
        %763 = vmatprep.subr.mxu0 0.0
        %764 = vmatpush1.xpose.msra.mxu0 0.0
        %765 = vmatprep.subr.mxu0 0.0
        %766 = vmatpush1.xpose.msra.mxu0 0.0
        %767 = vmatprep.subr.mxu0 0.0
        %768 = vmatpush1.xpose.msra.mxu0 0.0
        %769 = vmatprep.subr.mxu0 0.0
        %770 = vmatpush1.xpose.msra.mxu0 0.0
        %771 = vmatprep.subr.mxu0 0.0
        %772 = vmatpush1.xpose.msra.mxu0 0.0
        %773 = vmatprep.subr.mxu0 0.0
        %774 = vmatpush1.xpose.msra.mxu0 0.0
        %775 = vmatprep.subr.mxu0 0.0
        %776 = vmatpush1.xpose.msra.mxu0 0.0
        %777 = vmatprep.subr.mxu0 0.0
        %778 = vmatpush1.xpose.msra.mxu0 0.0
        %779 = vmatprep.subr.mxu0 0.0
        %780 = vmatpush1.xpose.msra.mxu0 0.0
        %781 = vmatprep.subr.mxu0 0.0
        %782 = vmatpush1.xpose.msra.mxu0 0.0
        %783 = vmatprep.subr.mxu0 0.0
        %784 = vmatpush1.xpose.msra.mxu0 0.0
        %785 = vmatprep.subr.mxu0 0.0
        %786 = vmatpush1.xpose.msra.mxu0 0.0
        %787 = vmatprep.subr.mxu0 0.0
        %788 = vmatpush1.xpose.msra.mxu0 0.0
        %789 = vmatprep.subr.mxu0 0.0
        %790 = vmatpush1.xpose.msra.mxu0 0.0
        %791 = vmatprep.subr.mxu0 0.0
        %792 = vmatpush1.xpose.msra.mxu0 0.0
        %793 = vmatprep.subr.mxu0 0.0
        %794 = vmatpush1.xpose.msra.mxu0 0.0
        %795 = vmatprep.subr.mxu0 0.0
        %796 = vmatpush1.xpose.msra.mxu0 0.0
        %797 = vmatprep.subr.mxu0 0.0
        %798 = vmatpush1.xpose.msra.mxu0 0.0
        %799 = vmatprep.subr.mxu0 0.0
        %800 = vmatpush1.xpose.msra.mxu0 0.0
        %801 = vmatprep.subr.mxu0 0.0
        %802 = vmatpush1.xpose.msra.mxu0 0.0
        %803 = vmatprep.subr.mxu0 0.0
        %804 = vmatpush1.xpose.msra.mxu0 0.0
        %805 = vmatprep.subr.mxu0 0.0
        %806 = vmatpush1.xpose.msra.mxu0 0.0
        %807 = vmatprep.subr.mxu0 0.0
        %808 = vmatpush1.xpose.msra.mxu0 0.0
        %809 = vmatprep.subr.mxu0 0.0
        %810 = vmatpush1.xpose.msra.mxu0 0.0
        %811 = vmatprep.subr.mxu0 0.0
        %812 = vmatpush1.xpose.msra.mxu0 0.0
        %813 = vmatprep.mubr.f32.mxu0 0.0
        %v814 = vand.u32 %v663, 4294901760
        %815 = vmatmul.mubr.f32.gmra.mrb[0].mxu0 %v814
        %v816 = vpop.f32.mrb[0].mxu0
        %v817 = vadd.f32 %v741, %v816
        %v818 = vpop.f32.mrb[0].mxu0
        %819 = vdwg.mxu0
        %820 = vmatprep.subr.mxu0 0.0
        %v821 = vand.u32 %v666, 4294901760
        %v822 = vsub.f32 %v666, %v821
        %823 = vmatpush1.xpose.msra.mxu0 %v822
        %824 = vmatprep.subr.mxu0 0.0
        %825 = vmatpush1.xpose.msra.mxu0 0.0
        %826 = vmatprep.subr.mxu0 0.0
        %827 = vmatpush1.xpose.msra.mxu0 0.0
        %828 = vmatprep.subr.mxu0 0.0
        %829 = vmatpush1.xpose.msra.mxu0 0.0
        %830 = vmatprep.subr.mxu0 0.0
        %831 = vmatpush1.xpose.msra.mxu0 0.0
        %832 = vmatprep.subr.mxu0 0.0
        %833 = vmatpush1.xpose.msra.mxu0 0.0
        %834 = vmatprep.subr.mxu0 0.0
        %835 = vmatpush1.xpose.msra.mxu0 0.0
        %836 = vmatprep.subr.mxu0 0.0
        %837 = vmatpush1.xpose.msra.mxu0 0.0
        %838 = vmatprep.subr.mxu0 0.0
        %839 = vmatpush1.xpose.msra.mxu0 0.0
        %840 = vmatprep.subr.mxu0 0.0
        %841 = vmatpush1.xpose.msra.mxu0 0.0
        %842 = vmatprep.subr.mxu0 0.0
        %843 = vmatpush1.xpose.msra.mxu0 0.0
        %844 = vmatprep.subr.mxu0 0.0
        %845 = vmatpush1.xpose.msra.mxu0 0.0
        %846 = vmatprep.subr.mxu0 0.0
        %847 = vmatpush1.xpose.msra.mxu0 0.0
        %848 = vmatprep.subr.mxu0 0.0
        %849 = vmatpush1.xpose.msra.mxu0 0.0
        %850 = vmatprep.subr.mxu0 0.0
        %851 = vmatpush1.xpose.msra.mxu0 0.0
        %852 = vmatprep.subr.mxu0 0.0
        %853 = vmatpush1.xpose.msra.mxu0 0.0
        %854 = vmatprep.subr.mxu0 0.0
        %855 = vmatpush1.xpose.msra.mxu0 0.0
        %856 = vmatprep.subr.mxu0 0.0
        %857 = vmatpush1.xpose.msra.mxu0 0.0
        %858 = vmatprep.subr.mxu0 0.0
        %859 = vmatpush1.xpose.msra.mxu0 0.0
        %860 = vmatprep.subr.mxu0 0.0
        %861 = vmatpush1.xpose.msra.mxu0 0.0
        %862 = vmatprep.subr.mxu0 0.0
        %863 = vmatpush1.xpose.msra.mxu0 0.0
        %864 = vmatprep.subr.mxu0 0.0
        %865 = vmatpush1.xpose.msra.mxu0 0.0
        %866 = vmatprep.subr.mxu0 0.0
        %867 = vmatpush1.xpose.msra.mxu0 0.0
        %868 = vmatprep.subr.mxu0 0.0
        %869 = vmatpush1.xpose.msra.mxu0 0.0
        %870 = vmatprep.subr.mxu0 0.0
        %871 = vmatpush1.xpose.msra.mxu0 0.0
        %872 = vmatprep.subr.mxu0 0.0
        %873 = vmatpush1.xpose.msra.mxu0 0.0
        %874 = vmatprep.subr.mxu0 0.0
        %875 = vmatpush1.xpose.msra.mxu0 0.0
        %876 = vmatprep.subr.mxu0 0.0
        %877 = vmatpush1.xpose.msra.mxu0 0.0
        %878 = vmatprep.subr.mxu0 0.0
        %879 = vmatpush1.xpose.msra.mxu0 0.0
        %880 = vmatprep.subr.mxu0 0.0
        %881 = vmatpush1.xpose.msra.mxu0 0.0
        %882 = vmatprep.subr.mxu0 0.0
        %883 = vmatpush1.xpose.msra.mxu0 0.0
        %884 = vmatprep.subr.mxu0 0.0
        %885 = vmatpush1.xpose.msra.mxu0 0.0
        %886 = vmatprep.mubr.f32.mxu0 0.0
        %v887 = vand.u32 %v663, 4294901760
        %v888 = vsub.f32 %v663, %v887
        %889 = vmatmul.mubr.f32.gmra.mrb[0].mxu0 %v888
        %v890 = vpop.f32.mrb[0].mxu0
        %v891 = vadd.f32 %v817, %v890
        %v892 = vpop.f32.mrb[0].mxu0
        %893 = vdwg.mxu0
        %894 = vmatprep.subr.mxu0 0.0
        %v895 = vand.u32 %v666, 4294901760
        %896 = vmatpush1.xpose.msra.mxu0 %v895
        %897 = vmatprep.subr.mxu0 0.0
        %898 = vmatpush1.xpose.msra.mxu0 0.0
        %899 = vmatprep.subr.mxu0 0.0
        %900 = vmatpush1.xpose.msra.mxu0 0.0
        %901 = vmatprep.subr.mxu0 0.0
        %902 = vmatpush1.xpose.msra.mxu0 0.0
        %903 = vmatprep.subr.mxu0 0.0
        %904 = vmatpush1.xpose.msra.mxu0 0.0
        %905 = vmatprep.subr.mxu0 0.0
        %906 = vmatpush1.xpose.msra.mxu0 0.0
        %907 = vmatprep.subr.mxu0 0.0
        %908 = vmatpush1.xpose.msra.mxu0 0.0
        %909 = vmatprep.subr.mxu0 0.0
        %910 = vmatpush1.xpose.msra.mxu0 0.0
        %911 = vmatprep.subr.mxu0 0.0
        %912 = vmatpush1.xpose.msra.mxu0 0.0
        %913 = vmatprep.subr.mxu0 0.0
        %914 = vmatpush1.xpose.msra.mxu0 0.0
        %915 = vmatprep.subr.mxu0 0.0
        %916 = vmatpush1.xpose.msra.mxu0 0.0
        %917 = vmatprep.subr.mxu0 0.0
        %918 = vmatpush1.xpose.msra.mxu0 0.0
        %919 = vmatprep.subr.mxu0 0.0
        %920 = vmatpush1.xpose.msra.mxu0 0.0
        %921 = vmatprep.subr.mxu0 0.0
        %922 = vmatpush1.xpose.msra.mxu0 0.0
        %923 = vmatprep.subr.mxu0 0.0
        %924 = vmatpush1.xpose.msra.mxu0 0.0
        %925 = vmatprep.subr.mxu0 0.0
        %926 = vmatpush1.xpose.msra.mxu0 0.0
        %927 = vmatprep.subr.mxu0 0.0
        %928 = vmatpush1.xpose.msra.mxu0 0.0
        %929 = vmatprep.subr.mxu0 0.0
        %930 = vmatpush1.xpose.msra.mxu0 0.0
        %931 = vmatprep.subr.mxu0 0.0
        %932 = vmatpush1.xpose.msra.mxu0 0.0
        %933 = vmatprep.subr.mxu0 0.0
        %934 = vmatpush1.xpose.msra.mxu0 0.0
        %935 = vmatprep.subr.mxu0 0.0
        %936 = vmatpush1.xpose.msra.mxu0 0.0
        %937 = vmatprep.subr.mxu0 0.0
        %938 = vmatpush1.xpose.msra.mxu0 0.0
        %939 = vmatprep.subr.mxu0 0.0
        %940 = vmatpush1.xpose.msra.mxu0 0.0
        %941 = vmatprep.subr.mxu0 0.0
        %942 = vmatpush1.xpose.msra.mxu0 0.0
        %943 = vmatprep.subr.mxu0 0.0
        %944 = vmatpush1.xpose.msra.mxu0 0.0
        %945 = vmatprep.subr.mxu0 0.0
        %946 = vmatpush1.xpose.msra.mxu0 0.0
        %947 = vmatprep.subr.mxu0 0.0
        %948 = vmatpush1.xpose.msra.mxu0 0.0
        %949 = vmatprep.subr.mxu0 0.0
        %950 = vmatpush1.xpose.msra.mxu0 0.0
        %951 = vmatprep.subr.mxu0 0.0
        %952 = vmatpush1.xpose.msra.mxu0 0.0
        %953 = vmatprep.subr.mxu0 0.0
        %954 = vmatpush1.xpose.msra.mxu0 0.0
        %955 = vmatprep.subr.mxu0 0.0
        %956 = vmatpush1.xpose.msra.mxu0 0.0
        %957 = vmatprep.subr.mxu0 0.0
        %958 = vmatpush1.xpose.msra.mxu0 0.0
        %959 = vmatprep.mubr.f32.mxu0 0.0
        %v960 = vand.u32 %v663, 4294901760
        %v961 = vsub.f32 %v663, %v960
        %v962 = vand.u32 %v961, 4294901760
        %963 = vmatmul.mubr.f32.gmra.mrb[0].mxu0 %v962
        %v964 = vpop.f32.mrb[0].mxu0
        %v965 = vadd.f32 %v891, %v964
        %v966 = vpop.f32.mrb[0].mxu0
        %967 = vdwg.mxu0
        %968 = vmatprep.subr.mxu0 0.0
        %v969 = vand.u32 %v666, 4294901760
        %v970 = vsub.f32 %v666, %v969
        %v971 = vand.u32 %v970, 4294901760
        %972 = vmatpush1.xpose.msra.mxu0 %v971
        %973 = vmatprep.subr.mxu0 0.0
        %974 = vmatpush1.xpose.msra.mxu0 0.0
        %975 = vmatprep.subr.mxu0 0.0
        %976 = vmatpush1.xpose.msra.mxu0 0.0
        %977 = vmatprep.subr.mxu0 0.0
        %978 = vmatpush1.xpose.msra.mxu0 0.0
        %979 = vmatprep.subr.mxu0 0.0
        %980 = vmatpush1.xpose.msra.mxu0 0.0
        %981 = vmatprep.subr.mxu0 0.0
        %982 = vmatpush1.xpose.msra.mxu0 0.0
        %983 = vmatprep.subr.mxu0 0.0
        %984 = vmatpush1.xpose.msra.mxu0 0.0
        %985 = vmatprep.subr.mxu0 0.0
        %986 = vmatpush1.xpose.msra.mxu0 0.0
        %987 = vmatprep.subr.mxu0 0.0
        %988 = vmatpush1.xpose.msra.mxu0 0.0
        %989 = vmatprep.subr.mxu0 0.0
        %990 = vmatpush1.xpose.msra.mxu0 0.0
        %991 = vmatprep.subr.mxu0 0.0
        %992 = vmatpush1.xpose.msra.mxu0 0.0
        %993 = vmatprep.subr.mxu0 0.0
        %994 = vmatpush1.xpose.msra.mxu0 0.0
        %995 = vmatprep.subr.mxu0 0.0
        %996 = vmatpush1.xpose.msra.mxu0 0.0
        %997 = vmatprep.subr.mxu0 0.0
        %998 = vmatpush1.xpose.msra.mxu0 0.0
        %999 = vmatprep.subr.mxu0 0.0
        %1000 = vmatpush1.xpose.msra.mxu0 0.0
        %1001 = vmatprep.subr.mxu0 0.0
        %1002 = vmatpush1.xpose.msra.mxu0 0.0
        %1003 = vmatprep.subr.mxu0 0.0
        %1004 = vmatpush1.xpose.msra.mxu0 0.0
        %1005 = vmatprep.subr.mxu0 0.0
        %1006 = vmatpush1.xpose.msra.mxu0 0.0
        %1007 = vmatprep.subr.mxu0 0.0
        %1008 = vmatpush1.xpose.msra.mxu0 0.0
        %1009 = vmatprep.subr.mxu0 0.0
        %1010 = vmatpush1.xpose.msra.mxu0 0.0
        %1011 = vmatprep.subr.mxu0 0.0
        %1012 = vmatpush1.xpose.msra.mxu0 0.0
        %1013 = vmatprep.subr.mxu0 0.0
        %1014 = vmatpush1.xpose.msra.mxu0 0.0
        %1015 = vmatprep.subr.mxu0 0.0
        %1016 = vmatpush1.xpose.msra.mxu0 0.0
        %1017 = vmatprep.subr.mxu0 0.0
        %1018 = vmatpush1.xpose.msra.mxu0 0.0
        %1019 = vmatprep.subr.mxu0 0.0
        %1020 = vmatpush1.xpose.msra.mxu0 0.0
        %1021 = vmatprep.subr.mxu0 0.0
        %1022 = vmatpush1.xpose.msra.mxu0 0.0
        %1023 = vmatprep.subr.mxu0 0.0
        %1024 = vmatpush1.xpose.msra.mxu0 0.0
        %1025 = vmatprep.subr.mxu0 0.0
        %1026 = vmatpush1.xpose.msra.mxu0 0.0
        %1027 = vmatprep.subr.mxu0 0.0
        %1028 = vmatpush1.xpose.msra.mxu0 0.0
        %1029 = vmatprep.subr.mxu0 0.0
        %1030 = vmatpush1.xpose.msra.mxu0 0.0
        %1031 = vmatprep.subr.mxu0 0.0
        %1032 = vmatpush1.xpose.msra.mxu0 0.0
        %1033 = vmatprep.subr.mxu0 0.0
        %1034 = vmatpush1.xpose.msra.mxu0 0.0
        %1035 = vmatprep.mubr.f32.mxu0 0.0
        %v1036 = vand.u32 %v663, 4294901760
        %1037 = vmatmul.mubr.f32.gmra.mrb[0].mxu0 %v1036
        %v1038 = vpop.f32.mrb[0].mxu0
        %v1039 = vadd.f32 %v965, %v1038
        %v1040 = vpop.f32.mrb[0].mxu0
        %1041 = vdwg.mxu0
        %1042 = vmatprep.subr.mxu0 0.0
        %v1043 = vand.u32 %v666, 4294901760
        %1044 = vmatpush1.xpose.msra.mxu0 %v1043
        %1045 = vmatprep.subr.mxu0 0.0
        %1046 = vmatpush1.xpose.msra.mxu0 0.0
        %1047 = vmatprep.subr.mxu0 0.0
        %1048 = vmatpush1.xpose.msra.mxu0 0.0
        %1049 = vmatprep.subr.mxu0 0.0
        %1050 = vmatpush1.xpose.msra.mxu0 0.0
        %1051 = vmatprep.subr.mxu0 0.0
        %1052 = vmatpush1.xpose.msra.mxu0 0.0
        %1053 = vmatprep.subr.mxu0 0.0
        %1054 = vmatpush1.xpose.msra.mxu0 0.0
        %1055 = vmatprep.subr.mxu0 0.0
        %1056 = vmatpush1.xpose.msra.mxu0 0.0
        %1057 = vmatprep.subr.mxu0 0.0
        %1058 = vmatpush1.xpose.msra.mxu0 0.0
        %1059 = vmatprep.subr.mxu0 0.0
        %1060 = vmatpush1.xpose.msra.mxu0 0.0
        %1061 = vmatprep.subr.mxu0 0.0
        %1062 = vmatpush1.xpose.msra.mxu0 0.0
        %1063 = vmatprep.subr.mxu0 0.0
        %1064 = vmatpush1.xpose.msra.mxu0 0.0
        %1065 = vmatprep.subr.mxu0 0.0
        %1066 = vmatpush1.xpose.msra.mxu0 0.0
        %1067 = vmatprep.subr.mxu0 0.0
        %1068 = vmatpush1.xpose.msra.mxu0 0.0
        %1069 = vmatprep.subr.mxu0 0.0
        %1070 = vmatpush1.xpose.msra.mxu0 0.0
        %1071 = vmatprep.subr.mxu0 0.0
        %1072 = vmatpush1.xpose.msra.mxu0 0.0
        %1073 = vmatprep.subr.mxu0 0.0
        %1074 = vmatpush1.xpose.msra.mxu0 0.0
        %1075 = vmatprep.subr.mxu0 0.0
        %1076 = vmatpush1.xpose.msra.mxu0 0.0
        %1077 = vmatprep.subr.mxu0 0.0
        %1078 = vmatpush1.xpose.msra.mxu0 0.0
        %1079 = vmatprep.subr.mxu0 0.0
        %1080 = vmatpush1.xpose.msra.mxu0 0.0
        %1081 = vmatprep.subr.mxu0 0.0
        %1082 = vmatpush1.xpose.msra.mxu0 0.0
        %1083 = vmatprep.subr.mxu0 0.0
        %1084 = vmatpush1.xpose.msra.mxu0 0.0
        %1085 = vmatprep.subr.mxu0 0.0
        %1086 = vmatpush1.xpose.msra.mxu0 0.0
        %1087 = vmatprep.subr.mxu0 0.0
        %1088 = vmatpush1.xpose.msra.mxu0 0.0
        %1089 = vmatprep.subr.mxu0 0.0
        %1090 = vmatpush1.xpose.msra.mxu0 0.0
        %1091 = vmatprep.subr.mxu0 0.0
        %1092 = vmatpush1.xpose.msra.mxu0 0.0
        %1093 = vmatprep.subr.mxu0 0.0
        %1094 = vmatpush1.xpose.msra.mxu0 0.0
        %1095 = vmatprep.subr.mxu0 0.0
        %1096 = vmatpush1.xpose.msra.mxu0 0.0
        %1097 = vmatprep.subr.mxu0 0.0
        %1098 = vmatpush1.xpose.msra.mxu0 0.0
        %1099 = vmatprep.subr.mxu0 0.0
        %1100 = vmatpush1.xpose.msra.mxu0 0.0
        %1101 = vmatprep.subr.mxu0 0.0
        %1102 = vmatpush1.xpose.msra.mxu0 0.0
        %1103 = vmatprep.subr.mxu0 0.0
        %1104 = vmatpush1.xpose.msra.mxu0 0.0
        %1105 = vmatprep.subr.mxu0 0.0
        %1106 = vmatpush1.xpose.msra.mxu0 0.0
        %1107 = vmatprep.mubr.f32.mxu0 0.0
        %v1108 = vand.u32 %v663, 4294901760
        %1109 = vmatmul.mubr.f32.gmra.mrb[0].mxu0 %v1108
        %v1110 = vpop.f32.mrb[0].mxu0
        %v1111 = vadd.f32 %v1039, %v1110
        %v1112 = vpop.f32.mrb[0].mxu0
        %1113 = vdwg.mxu0
        %v1114 = vxor.u32 %v1111, 2147483648
        %v1115 = vmul.f32 %v1114, 1.442695
        %v1116 = vpow.pop %v1115
        %v1117 = vadd.f32 %v1116, 1.0
        %v1118 = vrcp.pop %v1117
        %v1119 = vmul.f32 1.0, %v1118
        %v1120 = vlaneseq
        %v1121 = vshrl.u32 %v1120, 7
        %v1122 = vsub.s32 0, %v1121
        %v1123 = vrot.slane %v1119, %v1122
        %1125 = vbcast.lane.b32.xlu0 %v1123, 256
        %v1126 = vpop.permute.xlu0 %1125
        %v1129 = vunpack.c.l.s4 839922192
        %v1130 = vunpack.c.0.s8 %v1129
        %v1131 = vlaneseq
        %v1132 = vshrl.u32 %v1131, 7
        %v1133 = vsub.s32 %v1130, %v1132
        %v1134 = vrot.slane %v1126, %v1133
        %v1136 = vmul.f32 %v187, %v1134
        %1137 = vst [vmem:[%s186] sm:$0xff] %v1136
        %s1138 = sand.u32 %s96, 1
        %s1139 = scalar_lea.sflag [#allocation4], %s1138
        %s1140 = sand.u32 %s96, 1
        %s1141 = smul.addr %s1140, 8
        %s1142 = scalar_lea.vmem [#allocation5], %s1141
        // Predicated region
        $region37: #{tpu_custom_call.1} parent=31 // pred_check
          %p1143 = pneg %p106
        $region38: #{tpu_custom_call.1} parent=31 // pred_check_branch
          %1145 = sbr.rel (%p1143) target = $region40
        $region39: #{tpu_custom_call.1} parent=31 // pred_region
          %s1147 = ssub.s32 128, 128
          %1148 = vsyncadd %s1139, %s1147
          %s1149 = smul.addr %s20, 2
          %s1150 = smul.addr %s1149, 64
          %s1151 = scalar_lea.hbm %s3, %s1150
          %s1153 = sshll.u32 %s1142, 4
          %s1154 = int_to_ptr.vmem [resolvable:$true] %s1153
          %1156 = dma.vmem_to_hbm [thread:$0]  %s1154, 128, %s1151, %s1139
        $region40: #{tpu_custom_call.1} parent=31 // pred_fallthru
          _
      $region32: #{tpu_custom_call.1} parent=5 // pred_fallthru
        _
      %p1157 = scmp.le.s32.totalorder 2, %s15
      // Predicated region
      $region41: #{tpu_custom_call.1} parent=5 // pred_check
        %p1158 = pneg %p1157
      $region42: #{tpu_custom_call.1} parent=5 // pred_check_branch
        %1160 = sbr.rel (%p1158) target = $region44
      $region43: #{tpu_custom_call.1} parent=5 // pred_region
        %s1161 = ssub.s32 %s15, 2
        // Predicated region
        $region45: #{tpu_custom_call.1} parent=43 // pred_check
          %p1162 = pneg %p112
        $region46: #{tpu_custom_call.1} parent=43 // pred_check_branch
          %1164 = sbr.rel (%p1162) target = $region48
        $region47: #{tpu_custom_call.1} parent=43 // pred_region
          %s1165 = sand.u32 %s97, 1
          %s1166 = scalar_lea.sflag [#allocation4], %s1165
          %s1167 = sand.u32 %s97, 1
          %s1168 = smul.addr %s1167, 8
          %s1169 = scalar_lea.vmem [#allocation5], %s1168
          %1170 = dma.done %s1166, 128
        $region48: #{tpu_custom_call.1} parent=43 // pred_fallthru
          _
      $region44: #{tpu_custom_call.1} parent=5 // pred_fallthru
        _
    $region6: #{tpu_custom_call.1} parent=1 // loop_footer
      %s19 = sadd.s32 1, %s15
    $region7: #{tpu_custom_call.1} parent=1 // loop_footer_branch
      %14 = sbr.rel target = $region3
    $region8: #{tpu_custom_call.1} parent=1 // loop_exit
      _
    %1171 = vsyncpa [#allocation3], 1
    %s1172 = scalar_lea.sflag [#allocation3], 1
    %1173 = vsyncpa %s1172, 1
    %1174 = vsyncpa [#allocation4], 1
    %s1175 = scalar_lea.sflag [#allocation4], 1
    %1176 = vsyncpa %s1175, 1

</llo_original>
